<compile_context>
chip_gen: v6e
topology: v6e:2x2x1
jax: 0.10.0
libtpu: 0.0.40
codegen_flags: <defaults>
</compile_context>

<pallas_src>
import jax
import jax.numpy as jnp
from jax.experimental import pallas as pl
from jax.experimental.pallas import tpu as pltpu


def mlp_kernel(xt_ref, w1_ref, b1_ref, w2_ref, b2_ref, out_ref):
    # xt_ref: (D, TB)  batch on lanes
    # w1_ref: (H, D), b1_ref: (H, 1)   -- PyTorch (out, in) layout
    # w2_ref: (C, H), b2_ref: (C, 1)
    # out_ref: (C, TB)
    D, TB = xt_ref.shape
    H = w1_ref.shape[0]
    C = w2_ref.shape[0]

    xt = xt_ref[...]                       # (D, TB)
    w1 = w1_ref[...]                       # (H, D)

    # Hidden layer: h[j, b] = sum_d w1[j, d] * x[b, d] + b1[j]
    # D is tiny & static -> unrolled VPU broadcast-FMAs, no MXU round-trip.
    h = jnp.broadcast_to(b1_ref[...], (H, TB))
    for d in range(D):
        h = h + w1[:, d : d + 1] * xt[d : d + 1, :]
    h = jnp.maximum(h, 0.0)                # ReLU (inplace=True in torch is semantically identical)

    # Classifier: logits[c, b] = sum_j w2[c, j] * h[j, b] + b2[c]
    # H-term weighted sum over lane-resident batch rows (VPU).
    w2 = w2_ref[...]                       # (C, H)
    logits = jnp.broadcast_to(b2_ref[...], (C, TB))
    for j in range(H):
        logits = logits + w2[:, j : j + 1] * h[j : j + 1, :]

    out_ref[...] = logits.astype(out_ref.dtype)


def mlp_forward(x, w1, b1, w2, b2, *, tb=512):
    """x: (B, D) f32; w1: (H, D); b1: (H,); w2: (C, H); b2: (C,) -> (B, C).

    Weights/biases are in native PyTorch nn.Linear layout (out_features, in_features).
    """
    B, D = x.shape
    H = w1.shape[0]
    C = w2.shape[0]

    # Batch tile: multiple of 128 (lane width), no larger than the padded batch.
    tb = min(tb, pl.cdiv(B, 128) * 128)
    padded_B = pl.cdiv(B, tb) * tb
    nb = padded_B // tb

    # Layout plumbing (cheap, in the wrapper): batch-minor x, column biases.
    xt = jnp.pad(x.T, ((0, 0), (0, padded_B - B)))   # (D, padded_B)
    b1c = b1.reshape(H, 1)
    b2c = b2.reshape(C, 1)

    out_t = pl.pallas_call(
        mlp_kernel,
        out_shape=jax.ShapeDtypeStruct((C, padded_B), jnp.float32),
        grid=(nb,),
        in_specs=[
            pl.BlockSpec((D, tb), lambda i: (0, i)),   # x tile, streamed per grid step
            pl.BlockSpec((H, D), lambda i: (0, 0)),    # resident weights (fetched once)
            pl.BlockSpec((H, 1), lambda i: (0, 0)),
            pl.BlockSpec((C, H), lambda i: (0, 0)),
            pl.BlockSpec((C, 1), lambda i: (0, 0)),
        ],
        out_specs=pl.BlockSpec((C, tb), lambda i: (0, i)),  # lane-dense output tile
        compiler_params=pltpu.CompilerParams(
            dimension_semantics=("parallel",),          # batch tiles are independent
            vmem_limit_bytes=32 * 1024 * 1024,          # explicit; safe on v5e/v6e/v7x
        ),
    )(xt, w1, b1c, w2, b2c)

    return out_t[:, :B].T                               # (B, C)


def init_params(key, input_dim, num_hidden_nodes, num_classes):
    """Mirror nn.Linear default init: uniform(-1/sqrt(fan_in), 1/sqrt(fan_in)); (out, in) layout."""
    k1, k2, k3, k4 = jax.random.split(key, 4)
    bound1 = 1.0 / jnp.sqrt(jnp.float32(input_dim))
    bound2 = 1.0 / jnp.sqrt(jnp.float32(num_hidden_nodes))
    w1 = jax.random.uniform(k1, (num_hidden_nodes, input_dim), jnp.float32, -bound1, bound1)
    b1 = jax.random.uniform(k2, (num_hidden_nodes,), jnp.float32, -bound1, bound1)
    w2 = jax.random.uniform(k3, (num_classes, num_hidden_nodes), jnp.float32, -bound2, bound2)
    b2 = jax.random.uniform(k4, (num_classes,), jnp.float32, -bound2, bound2)
    return w1, b1, w2, b2


def _reference(x, w1, b1, w2, b2):
    return jnp.maximum(x @ w1.T + b1, 0.0) @ w2.T + b2


if __name__ == "__main__":
    # Module defaults: input_dim=2, num_hidden_nodes=20, num_classes=1.
    input_dim = 2
    num_hidden_nodes = 20
    num_classes = 1

    key = jax.random.PRNGKey(0)
    kx, kp, kx2 = jax.random.split(key, 3)
    w1, b1, w2, b2 = init_params(kp, input_dim, num_hidden_nodes, num_classes)

    # Small batch (single 128-wide tile after padding).
    batch = 8
    x = jax.random.normal(kx, (batch, input_dim), dtype=jnp.float32)
    logits = mlp_forward(x, w1, b1, w2, b2)
    jax.block_until_ready(logits)
    assert logits.shape == (batch, num_classes)
    assert jnp.allclose(logits, _reference(x, w1, b1, w2, b2), atol=1e-5, rtol=1e-5), \
        "mismatch vs reference (small batch)"

    # Larger, non-multiple-of-128 batch: exercises the multi-tile grid + padding slice.
    batch2 = 1000
    x2 = jax.random.normal(kx2, (batch2, input_dim), dtype=jnp.float32)
    logits2 = mlp_forward(x2, w1, b1, w2, b2)
    jax.block_until_ready(logits2)
    assert logits2.shape == (batch2, num_classes)
    assert jnp.allclose(logits2, _reference(x2, w1, b1, w2, b2), atol=1e-5, rtol=1e-5), \
        "mismatch vs reference (large batch)"

    print("KERNEL_OK")
</pallas_src>

<mosaic_0001>
module attributes {stable_mosaic.version = 11 : i64} {
  func.func @mlp_kernel(%arg0: i32, %arg1: memref<2x128xf32, #tpu.memory_space<vmem>>, %arg2: memref<20x2xf32, #tpu.memory_space<vmem>>, %arg3: memref<20x1xf32, #tpu.memory_space<vmem>>, %arg4: memref<1x20xf32, #tpu.memory_space<vmem>>, %arg5: memref<1x1xf32, #tpu.memory_space<vmem>>, %arg6: memref<1x128xf32, #tpu.memory_space<vmem>>) attributes {dimension_semantics = [#tpu.dimension_semantics<parallel>], iteration_bounds = array<i64: 1>, scalar_prefetch = 0 : i64, scratch_operands = 0 : i64, tpu.core_type = #tpu.core_type<tc>, window_params = [{transform_indices = @transform_0, window_bounds = array<i64: 2, 128>}, {pipeline_mode = #tpu.pipeline_mode<synchronous>, transform_indices = @transform_1, window_bounds = array<i64: 20, 2>}, {pipeline_mode = #tpu.pipeline_mode<synchronous>, transform_indices = @transform_2, window_bounds = array<i64: 20, 1>}, {pipeline_mode = #tpu.pipeline_mode<synchronous>, transform_indices = @transform_3, window_bounds = array<i64: 1, 20>}, {pipeline_mode = #tpu.pipeline_mode<synchronous>, transform_indices = @transform_4, window_bounds = array<i64: 1, 1>}, {transform_indices = @transform_5, window_bounds = array<i64: 1, 128>}]} {
    %c0 = arith.constant 0 : index
    %c0_0 = arith.constant 0 : index
    %0 = vector.load %arg1[%c0, %c0_0] : memref<2x128xf32, #tpu.memory_space<vmem>>, vector<2x128xf32>
    %c0_1 = arith.constant 0 : index
    %c0_2 = arith.constant 0 : index
    %1 = vector.load %arg2[%c0_1, %c0_2] : memref<20x2xf32, #tpu.memory_space<vmem>>, vector<20x2xf32>
    %c0_3 = arith.constant 0 : index
    %c0_4 = arith.constant 0 : index
    %2 = vector.load %arg3[%c0_3, %c0_4] : memref<20x1xf32, #tpu.memory_space<vmem>>, vector<20x1xf32>
    %3 = vector.shape_cast %2 : vector<20x1xf32> to vector<20x1xf32>
    %4 = vector.broadcast %3 : vector<20x1xf32> to vector<20x128xf32>
    %5 = vector.extract_strided_slice %1 {offsets = [0, 0], sizes = [20, 1], strides = [1, 1]} : vector<20x2xf32> to vector<20x1xf32>
    %6 = vector.extract_strided_slice %0 {offsets = [0, 0], sizes = [1, 128], strides = [1, 1]} : vector<2x128xf32> to vector<1x128xf32>
    %7 = vector.broadcast %5 : vector<20x1xf32> to vector<20x128xf32>
    %8 = vector.broadcast %6 : vector<1x128xf32> to vector<20x128xf32>
    %9 = arith.mulf %7, %8 : vector<20x128xf32>
    %10 = arith.addf %4, %9 : vector<20x128xf32>
    %11 = vector.extract_strided_slice %1 {offsets = [0, 1], sizes = [20, 1], strides = [1, 1]} : vector<20x2xf32> to vector<20x1xf32>
    %12 = vector.extract_strided_slice %0 {offsets = [1, 0], sizes = [1, 128], strides = [1, 1]} : vector<2x128xf32> to vector<1x128xf32>
    %13 = vector.broadcast %11 : vector<20x1xf32> to vector<20x128xf32>
    %14 = vector.broadcast %12 : vector<1x128xf32> to vector<20x128xf32>
    %15 = arith.mulf %13, %14 : vector<20x128xf32>
    %16 = arith.addf %10, %15 : vector<20x128xf32>
    %cst = arith.constant 0.000000e+00 : f32
    %17 = vector.broadcast %cst : f32 to vector<20x128xf32>
    %18 = arith.maximumf %16, %17 : vector<20x128xf32>
    %c0_5 = arith.constant 0 : index
    %c0_6 = arith.constant 0 : index
    %19 = vector.load %arg4[%c0_5, %c0_6] : memref<1x20xf32, #tpu.memory_space<vmem>>, vector<1x20xf32>
    %c0_7 = arith.constant 0 : index
    %c0_8 = arith.constant 0 : index
    %20 = vector.load %arg5[%c0_7, %c0_8] : memref<1x1xf32, #tpu.memory_space<vmem>>, vector<1x1xf32>
    %21 = vector.shape_cast %20 : vector<1x1xf32> to vector<1x1xf32>
    %22 = vector.broadcast %21 : vector<1x1xf32> to vector<1x128xf32>
    %23 = vector.extract_strided_slice %19 {offsets = [0, 0], sizes = [1, 1], strides = [1, 1]} : vector<1x20xf32> to vector<1x1xf32>
    %24 = vector.extract_strided_slice %18 {offsets = [0, 0], sizes = [1, 128], strides = [1, 1]} : vector<20x128xf32> to vector<1x128xf32>
    %25 = vector.broadcast %23 : vector<1x1xf32> to vector<1x128xf32>
    %26 = arith.mulf %25, %24 : vector<1x128xf32>
    %27 = arith.addf %22, %26 : vector<1x128xf32>
    %28 = vector.extract_strided_slice %19 {offsets = [0, 1], sizes = [1, 1], strides = [1, 1]} : vector<1x20xf32> to vector<1x1xf32>
    %29 = vector.extract_strided_slice %18 {offsets = [1, 0], sizes = [1, 128], strides = [1, 1]} : vector<20x128xf32> to vector<1x128xf32>
    %30 = vector.broadcast %28 : vector<1x1xf32> to vector<1x128xf32>
    %31 = arith.mulf %30, %29 : vector<1x128xf32>
    %32 = arith.addf %27, %31 : vector<1x128xf32>
    %33 = vector.extract_strided_slice %19 {offsets = [0, 2], sizes = [1, 1], strides = [1, 1]} : vector<1x20xf32> to vector<1x1xf32>
    %34 = vector.extract_strided_slice %18 {offsets = [2, 0], sizes = [1, 128], strides = [1, 1]} : vector<20x128xf32> to vector<1x128xf32>
    %35 = vector.broadcast %33 : vector<1x1xf32> to vector<1x128xf32>
    %36 = arith.mulf %35, %34 : vector<1x128xf32>
    %37 = arith.addf %32, %36 : vector<1x128xf32>
    %38 = vector.extract_strided_slice %19 {offsets = [0, 3], sizes = [1, 1], strides = [1, 1]} : vector<1x20xf32> to vector<1x1xf32>
    %39 = vector.extract_strided_slice %18 {offsets = [3, 0], sizes = [1, 128], strides = [1, 1]} : vector<20x128xf32> to vector<1x128xf32>
    %40 = vector.broadcast %38 : vector<1x1xf32> to vector<1x128xf32>
    %41 = arith.mulf %40, %39 : vector<1x128xf32>
    %42 = arith.addf %37, %41 : vector<1x128xf32>
    %43 = vector.extract_strided_slice %19 {offsets = [0, 4], sizes = [1, 1], strides = [1, 1]} : vector<1x20xf32> to vector<1x1xf32>
    %44 = vector.extract_strided_slice %18 {offsets = [4, 0], sizes = [1, 128], strides = [1, 1]} : vector<20x128xf32> to vector<1x128xf32>
    %45 = vector.broadcast %43 : vector<1x1xf32> to vector<1x128xf32>
    %46 = arith.mulf %45, %44 : vector<1x128xf32>
    %47 = arith.addf %42, %46 : vector<1x128xf32>
    %48 = vector.extract_strided_slice %19 {offsets = [0, 5], sizes = [1, 1], strides = [1, 1]} : vector<1x20xf32> to vector<1x1xf32>
    %49 = vector.extract_strided_slice %18 {offsets = [5, 0], sizes = [1, 128], strides = [1, 1]} : vector<20x128xf32> to vector<1x128xf32>
    %50 = vector.broadcast %48 : vector<1x1xf32> to vector<1x128xf32>
    %51 = arith.mulf %50, %49 : vector<1x128xf32>
    %52 = arith.addf %47, %51 : vector<1x128xf32>
    %53 = vector.extract_strided_slice %19 {offsets = [0, 6], sizes = [1, 1], strides = [1, 1]} : vector<1x20xf32> to vector<1x1xf32>
    %54 = vector.extract_strided_slice %18 {offsets = [6, 0], sizes = [1, 128], strides = [1, 1]} : vector<20x128xf32> to vector<1x128xf32>
    %55 = vector.broadcast %53 : vector<1x1xf32> to vector<1x128xf32>
    %56 = arith.mulf %55, %54 : vector<1x128xf32>
    %57 = arith.addf %52, %56 : vector<1x128xf32>
    %58 = vector.extract_strided_slice %19 {offsets = [0, 7], sizes = [1, 1], strides = [1, 1]} : vector<1x20xf32> to vector<1x1xf32>
    %59 = vector.extract_strided_slice %18 {offsets = [7, 0], sizes = [1, 128], strides = [1, 1]} : vector<20x128xf32> to vector<1x128xf32>
    %60 = vector.broadcast %58 : vector<1x1xf32> to vector<1x128xf32>
    %61 = arith.mulf %60, %59 : vector<1x128xf32>
    %62 = arith.addf %57, %61 : vector<1x128xf32>
    %63 = vector.extract_strided_slice %19 {offsets = [0, 8], sizes = [1, 1], strides = [1, 1]} : vector<1x20xf32> to vector<1x1xf32>
    %64 = vector.extract_strided_slice %18 {offsets = [8, 0], sizes = [1, 128], strides = [1, 1]} : vector<20x128xf32> to vector<1x128xf32>
    %65 = vector.broadcast %63 : vector<1x1xf32> to vector<1x128xf32>
    %66 = arith.mulf %65, %64 : vector<1x128xf32>
    %67 = arith.addf %62, %66 : vector<1x128xf32>
    %68 = vector.extract_strided_slice %19 {offsets = [0, 9], sizes = [1, 1], strides = [1, 1]} : vector<1x20xf32> to vector<1x1xf32>
    %69 = vector.extract_strided_slice %18 {offsets = [9, 0], sizes = [1, 128], strides = [1, 1]} : vector<20x128xf32> to vector<1x128xf32>
    %70 = vector.broadcast %68 : vector<1x1xf32> to vector<1x128xf32>
    %71 = arith.mulf %70, %69 : vector<1x128xf32>
    %72 = arith.addf %67, %71 : vector<1x128xf32>
    %73 = vector.extract_strided_slice %19 {offsets = [0, 10], sizes = [1, 1], strides = [1, 1]} : vector<1x20xf32> to vector<1x1xf32>
    %74 = vector.extract_strided_slice %18 {offsets = [10, 0], sizes = [1, 128], strides = [1, 1]} : vector<20x128xf32> to vector<1x128xf32>
    %75 = vector.broadcast %73 : vector<1x1xf32> to vector<1x128xf32>
    %76 = arith.mulf %75, %74 : vector<1x128xf32>
    %77 = arith.addf %72, %76 : vector<1x128xf32>
    %78 = vector.extract_strided_slice %19 {offsets = [0, 11], sizes = [1, 1], strides = [1, 1]} : vector<1x20xf32> to vector<1x1xf32>
    %79 = vector.extract_strided_slice %18 {offsets = [11, 0], sizes = [1, 128], strides = [1, 1]} : vector<20x128xf32> to vector<1x128xf32>
    %80 = vector.broadcast %78 : vector<1x1xf32> to vector<1x128xf32>
    %81 = arith.mulf %80, %79 : vector<1x128xf32>
    %82 = arith.addf %77, %81 : vector<1x128xf32>
    %83 = vector.extract_strided_slice %19 {offsets = [0, 12], sizes = [1, 1], strides = [1, 1]} : vector<1x20xf32> to vector<1x1xf32>
    %84 = vector.extract_strided_slice %18 {offsets = [12, 0], sizes = [1, 128], strides = [1, 1]} : vector<20x128xf32> to vector<1x128xf32>
    %85 = vector.broadcast %83 : vector<1x1xf32> to vector<1x128xf32>
    %86 = arith.mulf %85, %84 : vector<1x128xf32>
    %87 = arith.addf %82, %86 : vector<1x128xf32>
    %88 = vector.extract_strided_slice %19 {offsets = [0, 13], sizes = [1, 1], strides = [1, 1]} : vector<1x20xf32> to vector<1x1xf32>
    %89 = vector.extract_strided_slice %18 {offsets = [13, 0], sizes = [1, 128], strides = [1, 1]} : vector<20x128xf32> to vector<1x128xf32>
    %90 = vector.broadcast %88 : vector<1x1xf32> to vector<1x128xf32>
    %91 = arith.mulf %90, %89 : vector<1x128xf32>
    %92 = arith.addf %87, %91 : vector<1x128xf32>
    %93 = vector.extract_strided_slice %19 {offsets = [0, 14], sizes = [1, 1], strides = [1, 1]} : vector<1x20xf32> to vector<1x1xf32>
    %94 = vector.extract_strided_slice %18 {offsets = [14, 0], sizes = [1, 128], strides = [1, 1]} : vector<20x128xf32> to vector<1x128xf32>
    %95 = vector.broadcast %93 : vector<1x1xf32> to vector<1x128xf32>
    %96 = arith.mulf %95, %94 : vector<1x128xf32>
    %97 = arith.addf %92, %96 : vector<1x128xf32>
    %98 = vector.extract_strided_slice %19 {offsets = [0, 15], sizes = [1, 1], strides = [1, 1]} : vector<1x20xf32> to vector<1x1xf32>
    %99 = vector.extract_strided_slice %18 {offsets = [15, 0], sizes = [1, 128], strides = [1, 1]} : vector<20x128xf32> to vector<1x128xf32>
    %100 = vector.broadcast %98 : vector<1x1xf32> to vector<1x128xf32>
    %101 = arith.mulf %100, %99 : vector<1x128xf32>
    %102 = arith.addf %97, %101 : vector<1x128xf32>
    %103 = vector.extract_strided_slice %19 {offsets = [0, 16], sizes = [1, 1], strides = [1, 1]} : vector<1x20xf32> to vector<1x1xf32>
    %104 = vector.extract_strided_slice %18 {offsets = [16, 0], sizes = [1, 128], strides = [1, 1]} : vector<20x128xf32> to vector<1x128xf32>
    %105 = vector.broadcast %103 : vector<1x1xf32> to vector<1x128xf32>
    %106 = arith.mulf %105, %104 : vector<1x128xf32>
    %107 = arith.addf %102, %106 : vector<1x128xf32>
    %108 = vector.extract_strided_slice %19 {offsets = [0, 17], sizes = [1, 1], strides = [1, 1]} : vector<1x20xf32> to vector<1x1xf32>
    %109 = vector.extract_strided_slice %18 {offsets = [17, 0], sizes = [1, 128], strides = [1, 1]} : vector<20x128xf32> to vector<1x128xf32>
    %110 = vector.broadcast %108 : vector<1x1xf32> to vector<1x128xf32>
    %111 = arith.mulf %110, %109 : vector<1x128xf32>
    %112 = arith.addf %107, %111 : vector<1x128xf32>
    %113 = vector.extract_strided_slice %19 {offsets = [0, 18], sizes = [1, 1], strides = [1, 1]} : vector<1x20xf32> to vector<1x1xf32>
    %114 = vector.extract_strided_slice %18 {offsets = [18, 0], sizes = [1, 128], strides = [1, 1]} : vector<20x128xf32> to vector<1x128xf32>
    %115 = vector.broadcast %113 : vector<1x1xf32> to vector<1x128xf32>
    %116 = arith.mulf %115, %114 : vector<1x128xf32>
    %117 = arith.addf %112, %116 : vector<1x128xf32>
    %118 = vector.extract_strided_slice %19 {offsets = [0, 19], sizes = [1, 1], strides = [1, 1]} : vector<1x20xf32> to vector<1x1xf32>
    %119 = vector.extract_strided_slice %18 {offsets = [19, 0], sizes = [1, 128], strides = [1, 1]} : vector<20x128xf32> to vector<1x128xf32>
    %120 = vector.broadcast %118 : vector<1x1xf32> to vector<1x128xf32>
    %121 = arith.mulf %120, %119 : vector<1x128xf32>
    %122 = arith.addf %117, %121 : vector<1x128xf32>
    %c0_9 = arith.constant 0 : index
    %c0_10 = arith.constant 0 : index
    %123 = vector.load %arg6[%c0_9, %c0_10] : memref<1x128xf32, #tpu.memory_space<vmem>>, vector<1x128xf32>
    tpu.vector_store %arg6[%c0_9, %c0_10], %122 {strides = array<i32>} : memref<1x128xf32, #tpu.memory_space<vmem>>, vector<1x128xf32>,
    return
  }
  func.func @transform_0(%arg0: i32) -> (i32, i32) {
    %c0_i32 = arith.constant 0 : i32
    %c0_i32_0 = arith.constant 0 : i32
    return %c0_i32, %arg0 : i32, i32
  }
  func.func @transform_1(%arg0: i32) -> (i32, i32) {
    %c0_i32 = arith.constant 0 : i32
    %c0_i32_0 = arith.constant 0 : i32
    %c0_i32_1 = arith.constant 0 : i32
    return %c0_i32, %c0_i32_0 : i32, i32
  }
  func.func @transform_2(%arg0: i32) -> (i32, i32) {
    %c0_i32 = arith.constant 0 : i32
    %c0_i32_0 = arith.constant 0 : i32
    %c0_i32_1 = arith.constant 0 : i32
    return %c0_i32, %c0_i32_0 : i32, i32
  }
  func.func @transform_3(%arg0: i32) -> (i32, i32) {
    %c0_i32 = arith.constant 0 : i32
    %c0_i32_0 = arith.constant 0 : i32
    %c0_i32_1 = arith.constant 0 : i32
    return %c0_i32, %c0_i32_0 : i32, i32
  }
  func.func @transform_4(%arg0: i32) -> (i32, i32) {
    %c0_i32 = arith.constant 0 : i32
    %c0_i32_0 = arith.constant 0 : i32
    %c0_i32_1 = arith.constant 0 : i32
    return %c0_i32, %c0_i32_0 : i32, i32
  }
  func.func @transform_5(%arg0: i32) -> (i32, i32) {
    %c0_i32 = arith.constant 0 : i32
    %c0_i32_0 = arith.constant 0 : i32
    return %c0_i32, %arg0 : i32, i32
  }
}

</mosaic_0001>

<llo_original>
// kernel: tpu_custom_call.1
$region0: #{tpu_custom_call.1}
  #allocation0 [shape = 'u32[]', space=smem, size = 0x4, offset = 0x4, fixed_abs, tag = 'smem constant byte address 0x4 - core index']
  #allocation1 [shape = 'u32[144,128]{1,0:T(1,128)}', space=vmem, size = 0x12000, scoped, tag = 'internal scratch']
  #allocation2 [shape = 'f32[1,1]{1,0:T(1,128)S(1)}', space=vmem, size = 0x200, scoped, tag = 'scoped memory for tpu_custom_call.1']
  %s0 = inlined_call_operand.vmem [shape: f32[2,128], index: 0, kind: input, shape index: {}]
  %s1 = inlined_call_operand.vmem [shape: f32[20,2], index: 1, kind: input, shape index: {}]
  %s2 = inlined_call_operand.vmem [shape: f32[20,1], index: 2, kind: input, shape index: {}]
  %s3 = inlined_call_operand.vmem [shape: f32[1,20], index: 3, kind: input, shape index: {}]
  %s4 = inlined_call_operand.<no memory space> [shape: f32[1,1], index: 4, kind: input, shape index: {}]
  %s5 = inlined_call_operand.hbm [shape: f32[1,128], index: 5, kind: output, shape index: {}]
  %s6 = sld [smem:[#allocation0]]
  $region30: #{tpu_custom_call.1} parent=0
    _
  %s8 = ssub.s32 1, %s6
  %s9 = scalar_select 0, %s8, %s6
  %v10 = vstv %s4
  %11 = vst [vmem:[#allocation2] sm:$0x1] %v10
  $region1: #{tpu_custom_call.1} parent=0
    #allocation3 [shape = 'u8[512]{0}', space=vmem, size = 0x400, scoped, tag = 'output window, operand 0, single buffered']
    #allocation4 [shape = 's32[1]{0}', space=sflag, size = 0x4, scoped, tag = 'scoped memory for tpu_custom_call.1']
    %12 = vsyncpa [#allocation4], 0
    // Predicated region
    $region2: #{tpu_custom_call.1} parent=1 // pred_check
      _
    $region3: #{tpu_custom_call.1} parent=1 // pred_check_branch
      %14 = sbr.rel (0) target = $region5
    $region4: #{tpu_custom_call.1} parent=1 // pred_region
      _
    $region5: #{tpu_custom_call.1} parent=1 // pred_fallthru
      _
    // Predicated region
    $region6: #{tpu_custom_call.1} parent=1 // pred_check
      _
    $region7: #{tpu_custom_call.1} parent=1 // pred_check_branch
      %16 = sbr.rel (0) target = $region9
    $region8: #{tpu_custom_call.1} parent=1 // pred_region
      _
    $region9: #{tpu_custom_call.1} parent=1 // pred_fallthru
      _
    // Predicated region
    $region10: #{tpu_custom_call.1} parent=1 // pred_check
      _
    $region11: #{tpu_custom_call.1} parent=1 // pred_check_branch
      %18 = sbr.rel (0) target = $region13
    $region12: #{tpu_custom_call.1} parent=1 // pred_region
      _
    $region13: #{tpu_custom_call.1} parent=1 // pred_fallthru
      _
    // Predicated region
    $region14: #{tpu_custom_call.1} parent=1 // pred_check
      _
    $region15: #{tpu_custom_call.1} parent=1 // pred_check_branch
      %20 = sbr.rel (0) target = $region17
    $region16: #{tpu_custom_call.1} parent=1 // pred_region
      _
    $region17: #{tpu_custom_call.1} parent=1 // pred_fallthru
      _
    // Predicated region
    $region18: #{tpu_custom_call.1} parent=1 // pred_check
      _
    $region19: #{tpu_custom_call.1} parent=1 // pred_check_branch
      %22 = sbr.rel (0) target = $region21
    $region20: #{tpu_custom_call.1} parent=1 // pred_region
      _
    $region21: #{tpu_custom_call.1} parent=1 // pred_fallthru
      _
    %v23 = vld [vmem:[%s0] sm:$0x3]
    %v24 = vld [vmem:[%s1] sm:$0xff]
    %v25 = vld [vmem:[%s1 + $0x8] sm:$0xff]
    %v26 = vld [vmem:[%s1 + $0x10] sm:$0xf]
    %v27 = vld [vmem:[%s2] sm:$0xff]
    %v28 = vld [vmem:[%s2 + $0x8] sm:$0xff]
    %v29 = vld [vmem:[%s2 + $0x10] sm:$0xf]
    %31 = vset.pattern.permute.xlu0 0
    %32 = vperm.xlu0 %31, %v27
    %v33 = vpop.permute.xlu0 %32
    %36 = vset.pattern.permute.xlu0 0
    %37 = vperm.xlu0 %36, %v28
    %v38 = vpop.permute.xlu0 %37
    %41 = vset.pattern.permute.xlu0 0
    %42 = vperm.xlu0 %41, %v29
    %v43 = vpop.permute.xlu0 %42
    %46 = vset.pattern.permute.xlu0 0
    %47 = vperm.xlu0 %46, %v24
    %v48 = vpop.permute.xlu0 %47
    %51 = vset.pattern.permute.xlu0 0
    %52 = vperm.xlu0 %51, %v25
    %v53 = vpop.permute.xlu0 %52
    %56 = vset.pattern.permute.xlu0 0
    %57 = vperm.xlu0 %56, %v26
    %v58 = vpop.permute.xlu0 %57
    %v60 = vlaneseq
    %v61 = vshrl.u32 %v60, 7
    %v62 = vsub.s32 0, %v61
    %v63 = vrot.slane %v23, %v62
    %v64 = vmul.f32 %v48, %v63
    %v65 = vmul.f32 %v53, %v63
    %v66 = vmul.f32 %v58, %v63
    %v67 = vadd.f32 %v33, %v64
    %v68 = vadd.f32 %v38, %v65
    %v69 = vadd.f32 %v43, %v66
    %70 = vset.pattern.permute.xlu0 1
    %71 = vperm.xlu0 %70, %v24
    %v72 = vpop.permute.xlu0 %71
    %74 = vset.pattern.permute.xlu0 1
    %75 = vperm.xlu0 %74, %v25
    %v76 = vpop.permute.xlu0 %75
    %78 = vset.pattern.permute.xlu0 1
    %79 = vperm.xlu0 %78, %v26
    %v80 = vpop.permute.xlu0 %79
    %v82 = vlaneseq
    %v83 = vshrl.u32 %v82, 7
    %v84 = vsub.s32 1, %v83
    %v85 = vrot.slane %v23, %v84
    %v86 = vmul.f32 %v72, %v85
    %v87 = vmul.f32 %v76, %v85
    %v88 = vmul.f32 %v80, %v85
    %v89 = vadd.f32 %v67, %v86
    %v90 = vadd.f32 %v68, %v87
    %v91 = vadd.f32 %v69, %v88
    %v92 = vmax.f32 %v89, 0.0
    %v93 = vmax.f32 %v90, 0.0
    %v94 = vmax.f32 %v91, 0.0
    %v95 = vld [vmem:[%s3] sm:$0x1]
    %v96 = vld [vmem:[#allocation2] sm:$0x1]
    %98 = vset.pattern.permute.xlu0 0
    %99 = vperm.xlu0 %98, %v96
    %v100 = vpop.permute.xlu0 %99
    %v102 = vlaneseq
    %v103 = vshrl.u32 %v102, 7
    %v104 = vsub.s32 0, %v103
    %v105 = vrot.slane %v100, %v104
    %107 = vset.pattern.permute.xlu0 0
    %108 = vperm.xlu0 %107, %v95
    %v109 = vpop.permute.xlu0 %108
    %v111 = vlaneseq
    %v112 = vshrl.u32 %v111, 7
    %v113 = vsub.s32 0, %v112
    %v114 = vrot.slane %v109, %v113
    %v115 = vmul.f32 %v114, %v92
    %v116 = vadd.f32 %v105, %v115
    %117 = vset.pattern.permute.xlu0 1
    %118 = vperm.xlu0 %117, %v95
    %v119 = vpop.permute.xlu0 %118
    %v121 = vlaneseq
    %v122 = vshrl.u32 %v121, 7
    %v123 = vsub.s32 0, %v122
    %v124 = vrot.slane %v119, %v123
    %v125 = vmul.f32 %v124, %v92
    %v127 = vrot.slane %v125, 1
    %v129 = vadd.f32 %v116, %v127
    %130 = vset.pattern.permute.xlu0 2
    %131 = vperm.xlu0 %130, %v95
    %v132 = vpop.permute.xlu0 %131
    %v134 = vlaneseq
    %v135 = vshrl.u32 %v134, 7
    %v136 = vsub.s32 0, %v135
    %v137 = vrot.slane %v132, %v136
    %v138 = vmul.f32 %v137, %v92
    %v140 = vrot.slane %v138, 2
    %v142 = vadd.f32 %v129, %v140
    %143 = vset.pattern.permute.xlu0 3
    %144 = vperm.xlu0 %143, %v95
    %v145 = vpop.permute.xlu0 %144
    %v147 = vlaneseq
    %v148 = vshrl.u32 %v147, 7
    %v149 = vsub.s32 0, %v148
    %v150 = vrot.slane %v145, %v149
    %v151 = vmul.f32 %v150, %v92
    %v153 = vrot.slane %v151, 3
    %v155 = vadd.f32 %v142, %v153
    %156 = vset.pattern.permute.xlu0 4
    %157 = vperm.xlu0 %156, %v95
    %v158 = vpop.permute.xlu0 %157
    %v160 = vlaneseq
    %v161 = vshrl.u32 %v160, 7
    %v162 = vsub.s32 0, %v161
    %v163 = vrot.slane %v158, %v162
    %v164 = vmul.f32 %v163, %v92
    %v166 = vrot.slane %v164, 4
    %v168 = vadd.f32 %v155, %v166
    %169 = vset.pattern.permute.xlu0 5
    %170 = vperm.xlu0 %169, %v95
    %v171 = vpop.permute.xlu0 %170
    %v173 = vlaneseq
    %v174 = vshrl.u32 %v173, 7
    %v175 = vsub.s32 0, %v174
    %v176 = vrot.slane %v171, %v175
    %v177 = vmul.f32 %v176, %v92
    %v179 = vrot.slane %v177, 5
    %v181 = vadd.f32 %v168, %v179
    %182 = vset.pattern.permute.xlu0 6
    %183 = vperm.xlu0 %182, %v95
    %v184 = vpop.permute.xlu0 %183
    %v186 = vlaneseq
    %v187 = vshrl.u32 %v186, 7
    %v188 = vsub.s32 0, %v187
    %v189 = vrot.slane %v184, %v188
    %v190 = vmul.f32 %v189, %v92
    %v192 = vrot.slane %v190, 6
    %v194 = vadd.f32 %v181, %v192
    %195 = vset.pattern.permute.xlu0 7
    %196 = vperm.xlu0 %195, %v95
    %v197 = vpop.permute.xlu0 %196
    %v199 = vlaneseq
    %v200 = vshrl.u32 %v199, 7
    %v201 = vsub.s32 0, %v200
    %v202 = vrot.slane %v197, %v201
    %v203 = vmul.f32 %v202, %v92
    %v205 = vrot.slane %v203, 7
    %v207 = vadd.f32 %v194, %v205
    %208 = vset.pattern.permute.xlu0 8
    %209 = vperm.xlu0 %208, %v95
    %v210 = vpop.permute.xlu0 %209
    %v212 = vlaneseq
    %v213 = vshrl.u32 %v212, 7
    %v214 = vsub.s32 0, %v213
    %v215 = vrot.slane %v210, %v214
    %v216 = vmul.f32 %v215, %v93
    %v217 = vadd.f32 %v207, %v216
    %218 = vset.pattern.permute.xlu0 9
    %219 = vperm.xlu0 %218, %v95
    %v220 = vpop.permute.xlu0 %219
    %v222 = vlaneseq
    %v223 = vshrl.u32 %v222, 7
    %v224 = vsub.s32 0, %v223
    %v225 = vrot.slane %v220, %v224
    %v226 = vmul.f32 %v225, %v93
    %v228 = vrot.slane %v226, 1
    %v230 = vadd.f32 %v217, %v228
    %231 = vset.pattern.permute.xlu0 10
    %232 = vperm.xlu0 %231, %v95
    %v233 = vpop.permute.xlu0 %232
    %v235 = vlaneseq
    %v236 = vshrl.u32 %v235, 7
    %v237 = vsub.s32 0, %v236
    %v238 = vrot.slane %v233, %v237
    %v239 = vmul.f32 %v238, %v93
    %v241 = vrot.slane %v239, 2
    %v243 = vadd.f32 %v230, %v241
    %244 = vset.pattern.permute.xlu0 11
    %245 = vperm.xlu0 %244, %v95
    %v246 = vpop.permute.xlu0 %245
    %v248 = vlaneseq
    %v249 = vshrl.u32 %v248, 7
    %v250 = vsub.s32 0, %v249
    %v251 = vrot.slane %v246, %v250
    %v252 = vmul.f32 %v251, %v93
    %v254 = vrot.slane %v252, 3
    %v256 = vadd.f32 %v243, %v254
    %257 = vset.pattern.permute.xlu0 12
    %258 = vperm.xlu0 %257, %v95
    %v259 = vpop.permute.xlu0 %258
    %v261 = vlaneseq
    %v262 = vshrl.u32 %v261, 7
    %v263 = vsub.s32 0, %v262
    %v264 = vrot.slane %v259, %v263
    %v265 = vmul.f32 %v264, %v93
    %v267 = vrot.slane %v265, 4
    %v269 = vadd.f32 %v256, %v267
    %270 = vset.pattern.permute.xlu0 13
    %271 = vperm.xlu0 %270, %v95
    %v272 = vpop.permute.xlu0 %271
    %v274 = vlaneseq
    %v275 = vshrl.u32 %v274, 7
    %v276 = vsub.s32 0, %v275
    %v277 = vrot.slane %v272, %v276
    %v278 = vmul.f32 %v277, %v93
    %v280 = vrot.slane %v278, 5
    %v282 = vadd.f32 %v269, %v280
    %283 = vset.pattern.permute.xlu0 14
    %284 = vperm.xlu0 %283, %v95
    %v285 = vpop.permute.xlu0 %284
    %v287 = vlaneseq
    %v288 = vshrl.u32 %v287, 7
    %v289 = vsub.s32 0, %v288
    %v290 = vrot.slane %v285, %v289
    %v291 = vmul.f32 %v290, %v93
    %v293 = vrot.slane %v291, 6
    %v295 = vadd.f32 %v282, %v293
    %296 = vset.pattern.permute.xlu0 15
    %297 = vperm.xlu0 %296, %v95
    %v298 = vpop.permute.xlu0 %297
    %v300 = vlaneseq
    %v301 = vshrl.u32 %v300, 7
    %v302 = vsub.s32 0, %v301
    %v303 = vrot.slane %v298, %v302
    %v304 = vmul.f32 %v303, %v93
    %v306 = vrot.slane %v304, 7
    %v308 = vadd.f32 %v295, %v306
    %309 = vset.pattern.permute.xlu0 16
    %310 = vperm.xlu0 %309, %v95
    %v311 = vpop.permute.xlu0 %310
    %v313 = vlaneseq
    %v314 = vshrl.u32 %v313, 7
    %v315 = vsub.s32 0, %v314
    %v316 = vrot.slane %v311, %v315
    %v317 = vmul.f32 %v316, %v94
    %v318 = vadd.f32 %v308, %v317
    %319 = vset.pattern.permute.xlu0 17
    %320 = vperm.xlu0 %319, %v95
    %v321 = vpop.permute.xlu0 %320
    %v323 = vlaneseq
    %v324 = vshrl.u32 %v323, 7
    %v325 = vsub.s32 0, %v324
    %v326 = vrot.slane %v321, %v325
    %v327 = vmul.f32 %v326, %v94
    %v329 = vrot.slane %v327, 1
    %v331 = vadd.f32 %v318, %v329
    %332 = vset.pattern.permute.xlu0 18
    %333 = vperm.xlu0 %332, %v95
    %v334 = vpop.permute.xlu0 %333
    %v336 = vlaneseq
    %v337 = vshrl.u32 %v336, 7
    %v338 = vsub.s32 0, %v337
    %v339 = vrot.slane %v334, %v338
    %v340 = vmul.f32 %v339, %v94
    %v342 = vrot.slane %v340, 2
    %v344 = vadd.f32 %v331, %v342
    %345 = vset.pattern.permute.xlu0 19
    %346 = vperm.xlu0 %345, %v95
    %v347 = vpop.permute.xlu0 %346
    %v349 = vlaneseq
    %v350 = vshrl.u32 %v349, 7
    %v351 = vsub.s32 0, %v350
    %v352 = vrot.slane %v347, %v351
    %v353 = vmul.f32 %v352, %v94
    %v355 = vrot.slane %v353, 3
    %v357 = vadd.f32 %v344, %v355
    %358 = vst [vmem:[#allocation3] sm:$0x1] %v357
    // Predicated region
    $region22: #{tpu_custom_call.1} parent=1 // pred_check
      _
    $region23: #{tpu_custom_call.1} parent=1 // pred_check_branch
      %360 = sbr.rel (0) target = $region25
    $region24: #{tpu_custom_call.1} parent=1 // pred_region
      %s362 = ssub.s32 16, 16
      %363 = vsyncadd [#allocation4], %s362
      %s365 = sshll.u32 [#allocation3], 4
      %s366 = int_to_ptr.vmem [resolvable:$true] %s365
      %368 = dma.vmem_to_hbm [thread:$0]  %s366, 16, %s5, [#allocation4]
    $region25: #{tpu_custom_call.1} parent=1 // pred_fallthru
      _
    // Predicated region
    $region26: #{tpu_custom_call.1} parent=1 // pred_check
      _
    $region27: #{tpu_custom_call.1} parent=1 // pred_check_branch
      %370 = sbr.rel (0) target = $region29
    $region28: #{tpu_custom_call.1} parent=1 // pred_region
      %371 = dma.done [#allocation4], 16
    $region29: #{tpu_custom_call.1} parent=1 // pred_fallthru
      _
    %372 = vsyncpa [#allocation4], 1

</llo_original>
